<compile_context>
chip_gen: v7x
topology: tpu7x:2x2x1
jax: 0.10.0
libtpu: 0.0.40
codegen_flags: <defaults>
</compile_context>

<pallas_src>
import functools

import jax
import jax.numpy as jnp
from jax.experimental import pallas as pl
from jax.experimental.pallas import tpu as pltpu


def _prenorm_fused_kernel(x_ref, w_ref, bias_ref, o_ref, *, eps):
    """One (batch, spatial-tile) grid step.

    x_ref    : (1, C, T_HW)  input tile (any float dtype)
    w_ref    : (C, C)        1x1-conv weight with LayerNorm g folded in
    bias_ref : (C, 1)        conv bias with LayerNorm b folded in (f32)
    o_ref    : (1, C, T_HW)  output tile (input dtype)
    """
    C = x_ref.shape[1]

    x = x_ref[0].astype(jnp.float32)                 # (C, T_HW)

    # Channel-wise stats: sum(x) and sum(x*x) have no serial dependence, so the
    # two cross-sublane reductions can overlap; var = E[x^2] - mean^2.
    inv_c = jnp.float32(1.0 / C)
    s1 = jnp.sum(x, axis=0, keepdims=True)           # (1, T_HW)
    s2 = jnp.sum(x * x, axis=0, keepdims=True)       # (1, T_HW)
    mean = s1 * inv_c
    var = s2 * inv_c - mean * mean                   # unbiased=False
    inv_std = jax.lax.rsqrt(var + eps)
    xn = (x - mean) * inv_std                        # (C, T_HW), f32

    bias = bias_ref[...].astype(jnp.float32)         # (C, 1)

    if C < 32:
        # Tiny C: a (C,C)x(C,T_HW) MXU matmul would be almost entirely padding.
        # Do C broadcast-FMAs on the VPU instead (static Python unroll).
        w = w_ref[...].astype(jnp.float32)           # (C, C)
        acc = bias + w[:, 0:1] * xn[0:1, :]
        for c in range(1, C):
            acc = acc + w[:, c:c + 1] * xn[c:c + 1, :]
        out = acc
    else:
        # Large C: weight-stationary MXU matmul. The weight BlockSpec has a
        # constant index_map, so the (C, C) block stays resident across steps.
        out = jnp.dot(w_ref[...], xn.astype(w_ref.dtype),
                      preferred_element_type=jnp.float32) + bias

    o_ref[0] = out.astype(o_ref.dtype)


def _pick_spatial_tile(hw, c, dtype_bytes, *, vmem_budget_bytes=16 * 1024 * 1024,
                       max_tile=2048):
    """Largest lane-dense spatial tile: multiple of 128 that divides HW and is
    <= max_tile, whose double-buffered in+out tiles plus the resident weight fit
    a conservative VMEM budget (sized so it also fits v7x's smaller scoped VMEM).
    Falls back to the full (always-legal) extent when HW has no 128-multiple divisor.
    """
    cands = [t for t in range(128, min(hw, max_tile) + 1, 128) if hw % t == 0]
    if not cands:
        return hw

    def footprint(t):
        # 2x double-buffered input + 2x double-buffered output + weight + bias
        return 4 * c * t * dtype_bytes + c * c * dtype_bytes + 4 * c

    for t in reversed(cands):
        if footprint(t) <= vmem_budget_bytes:
            return t
    return cands[0]


@functools.partial(jax.jit, static_argnames=("eps",))
def prenorm_conv1x1(x_nchw, g, b, w, wb, eps=1e-5):
    """PreNorm(dim, fn=Conv2d(dim, dim, 1)):  fn(LayerNorm(x)).

    x_nchw: (B, C, H, W); g, b: (C,) LayerNorm affine; w: (C, C) 1x1-conv weight;
    wb: (C,) conv bias. I/O stays in x's dtype; stats are computed in f32.
    """
    B, C, H, W = x_nchw.shape
    HW = H * W
    x = x_nchw.reshape(B, C, HW)      # no dtype upcast: keep HBM traffic minimal

    # Fold the LayerNorm affine into the 1x1 conv:
    #   w @ (xn * g + b) + wb == (w * g[None, :]) @ xn + (w @ b + wb)
    w_f32 = w.astype(jnp.float32)
    w_fused = (w_f32 * g.reshape(1, C).astype(jnp.float32)).astype(w.dtype)
    bias_fused = (w_f32 @ b.reshape(C, 1).astype(jnp.float32)
                  + wb.reshape(C, 1).astype(jnp.float32))   # (C, 1), f32

    t_hw = _pick_spatial_tile(HW, C, x.dtype.itemsize)
    grid = (B, HW // t_hw)

    out = pl.pallas_call(
        functools.partial(_prenorm_fused_kernel, eps=eps),
        out_shape=jax.ShapeDtypeStruct((B, C, HW), x.dtype),
        grid_spec=pltpu.PrefetchScalarGridSpec(
            num_scalar_prefetch=0,
            grid=grid,
            in_specs=[
                pl.BlockSpec((1, C, t_hw), lambda i, j: (i, 0, j)),  # x tile
                pl.BlockSpec((C, C), lambda i, j: (0, 0)),           # fused weight
                pl.BlockSpec((C, 1), lambda i, j: (0, 0)),           # fused bias
            ],
            out_specs=pl.BlockSpec((1, C, t_hw), lambda i, j: (i, 0, j)),
        ),
        compiler_params=pltpu.CompilerParams(
            dimension_semantics=("parallel", "parallel")),
    )(x, w_fused, bias_fused)

    return out.reshape(B, C, H, W)


def _reference(x_nchw, g, b, w, wb, eps=1e-5):
    x = x_nchw.astype(jnp.float32)
    mean = jnp.mean(x, axis=1, keepdims=True)
    var = jnp.mean((x - mean) ** 2, axis=1, keepdims=True)   # unbiased=False
    normed = (x - mean) / jnp.sqrt(var + eps) * g.reshape(1, -1, 1, 1) \
        + b.reshape(1, -1, 1, 1)
    return jnp.einsum("oc,bchw->bohw", w.astype(jnp.float32), normed) \
        + wb.reshape(1, -1, 1, 1)


if __name__ == "__main__":
    B, C, H, W = 2, 4, 16, 16
    key = jax.random.PRNGKey(0)
    kx, kg, kb, kw, kwb = jax.random.split(key, 5)

    x = jax.random.normal(kx, (B, C, H, W), dtype=jnp.float32)

    # LayerNorm params (init: g=ones, b=zeros; perturb to exercise the folding path)
    g = 1.0 + 0.1 * jax.random.normal(kg, (C,), dtype=jnp.float32)
    b = 0.1 * jax.random.normal(kb, (C,), dtype=jnp.float32)

    # Deterministic 1x1-conv params for `fn`
    w = jax.random.normal(kw, (C, C), dtype=jnp.float32) * 0.1
    wb = jax.random.normal(kwb, (C,), dtype=jnp.float32) * 0.1

    out = prenorm_conv1x1(x, g, b, w, wb)
    out = jax.block_until_ready(out)

    ref = _reference(x, g, b, w, wb)
    assert out.shape == (B, C, H, W)
    assert jnp.allclose(out, ref, atol=1e-4, rtol=1e-4), "mismatch vs reference"

    print("KERNEL_OK")
</pallas_src>

<mosaic_0001>
module attributes {stable_mosaic.version = 11 : i64} {
  func.func @_prenorm_fused_kernel(%arg0: i32, %arg1: i32, %arg2: memref<1x4x256xf32, #tpu.memory_space<vmem>>, %arg3: memref<4x4xf32, #tpu.memory_space<vmem>>, %arg4: memref<4x1xf32, #tpu.memory_space<vmem>>, %arg5: memref<1x4x256xf32, #tpu.memory_space<vmem>>) attributes {dimension_semantics = [#tpu.dimension_semantics<parallel>, #tpu.dimension_semantics<parallel>], iteration_bounds = array<i64: 2, 1>, scalar_prefetch = 0 : i64, scratch_operands = 0 : i64, tpu.core_type = #tpu.core_type<tc>, window_params = [{transform_indices = @transform_0, window_bounds = array<i64: 1, 4, 256>}, {pipeline_mode = #tpu.pipeline_mode<synchronous>, transform_indices = @transform_1, window_bounds = array<i64: 4, 4>}, {pipeline_mode = #tpu.pipeline_mode<synchronous>, transform_indices = @transform_2, window_bounds = array<i64: 4, 1>}, {transform_indices = @transform_3, window_bounds = array<i64: 1, 4, 256>}]} {
    %c0 = arith.constant 0 : index
    %c0_0 = arith.constant 0 : index
    %c0_1 = arith.constant 0 : index
    %0 = vector.load %arg2[%c0, %c0_0, %c0_1] : memref<1x4x256xf32, #tpu.memory_space<vmem>>, vector<1x4x256xf32>
    %1 = vector.shape_cast %0 : vector<1x4x256xf32> to vector<4x256xf32>
    %cst = arith.constant dense<0.000000e+00> : vector<256xf32>
    %2 = vector.multi_reduction <add>, %1, %cst [0] : vector<4x256xf32> to vector<256xf32>
    %3 = vector.shape_cast %2 : vector<256xf32> to vector<1x256xf32>
    %4 = arith.mulf %1, %1 : vector<4x256xf32>
    %cst_2 = arith.constant dense<0.000000e+00> : vector<256xf32>
    %5 = vector.multi_reduction <add>, %4, %cst_2 [0] : vector<4x256xf32> to vector<256xf32>
    %6 = vector.shape_cast %5 : vector<256xf32> to vector<1x256xf32>
    %cst_3 = arith.constant 2.500000e-01 : f32
    %7 = vector.broadcast %cst_3 : f32 to vector<1x256xf32>
    %8 = arith.mulf %3, %7 : vector<1x256xf32>
    %cst_4 = arith.constant 2.500000e-01 : f32
    %9 = vector.broadcast %cst_4 : f32 to vector<1x256xf32>
    %10 = arith.mulf %6, %9 : vector<1x256xf32>
    %11 = arith.mulf %8, %8 : vector<1x256xf32>
    %12 = arith.subf %10, %11 : vector<1x256xf32>
    %cst_5 = arith.constant 9.99999974E-6 : f32
    %13 = vector.broadcast %cst_5 : f32 to vector<1x256xf32>
    %14 = arith.addf %12, %13 : vector<1x256xf32>
    %15 = math.rsqrt %14 : vector<1x256xf32>
    %16 = vector.broadcast %8 : vector<1x256xf32> to vector<4x256xf32>
    %17 = arith.subf %1, %16 : vector<4x256xf32>
    %18 = vector.broadcast %15 : vector<1x256xf32> to vector<4x256xf32>
    %19 = arith.mulf %17, %18 : vector<4x256xf32>
    %c0_6 = arith.constant 0 : index
    %c0_7 = arith.constant 0 : index
    %20 = vector.load %arg4[%c0_6, %c0_7] : memref<4x1xf32, #tpu.memory_space<vmem>>, vector<4x1xf32>
    %c0_8 = arith.constant 0 : index
    %c0_9 = arith.constant 0 : index
    %21 = vector.load %arg3[%c0_8, %c0_9] : memref<4x4xf32, #tpu.memory_space<vmem>>, vector<4x4xf32>
    %22 = vector.extract_strided_slice %21 {offsets = [0, 0], sizes = [4, 1], strides = [1, 1]} : vector<4x4xf32> to vector<4x1xf32>
    %23 = vector.extract_strided_slice %19 {offsets = [0, 0], sizes = [1, 256], strides = [1, 1]} : vector<4x256xf32> to vector<1x256xf32>
    %24 = vector.broadcast %22 : vector<4x1xf32> to vector<4x256xf32>
    %25 = vector.broadcast %23 : vector<1x256xf32> to vector<4x256xf32>
    %26 = arith.mulf %24, %25 : vector<4x256xf32>
    %27 = vector.broadcast %20 : vector<4x1xf32> to vector<4x256xf32>
    %28 = arith.addf %27, %26 : vector<4x256xf32>
    %29 = vector.extract_strided_slice %21 {offsets = [0, 1], sizes = [4, 1], strides = [1, 1]} : vector<4x4xf32> to vector<4x1xf32>
    %30 = vector.extract_strided_slice %19 {offsets = [1, 0], sizes = [1, 256], strides = [1, 1]} : vector<4x256xf32> to vector<1x256xf32>
    %31 = vector.broadcast %29 : vector<4x1xf32> to vector<4x256xf32>
    %32 = vector.broadcast %30 : vector<1x256xf32> to vector<4x256xf32>
    %33 = arith.mulf %31, %32 : vector<4x256xf32>
    %34 = arith.addf %28, %33 : vector<4x256xf32>
    %35 = vector.extract_strided_slice %21 {offsets = [0, 2], sizes = [4, 1], strides = [1, 1]} : vector<4x4xf32> to vector<4x1xf32>
    %36 = vector.extract_strided_slice %19 {offsets = [2, 0], sizes = [1, 256], strides = [1, 1]} : vector<4x256xf32> to vector<1x256xf32>
    %37 = vector.broadcast %35 : vector<4x1xf32> to vector<4x256xf32>
    %38 = vector.broadcast %36 : vector<1x256xf32> to vector<4x256xf32>
    %39 = arith.mulf %37, %38 : vector<4x256xf32>
    %40 = arith.addf %34, %39 : vector<4x256xf32>
    %41 = vector.extract_strided_slice %21 {offsets = [0, 3], sizes = [4, 1], strides = [1, 1]} : vector<4x4xf32> to vector<4x1xf32>
    %42 = vector.extract_strided_slice %19 {offsets = [3, 0], sizes = [1, 256], strides = [1, 1]} : vector<4x256xf32> to vector<1x256xf32>
    %43 = vector.broadcast %41 : vector<4x1xf32> to vector<4x256xf32>
    %44 = vector.broadcast %42 : vector<1x256xf32> to vector<4x256xf32>
    %45 = arith.mulf %43, %44 : vector<4x256xf32>
    %46 = arith.addf %40, %45 : vector<4x256xf32>
    %c0_10 = arith.constant 0 : index
    %c0_11 = arith.constant 0 : index
    %c0_12 = arith.constant 0 : index
    %47 = vector.load %arg5[%c0_10, %c0_11, %c0_12] : memref<1x4x256xf32, #tpu.memory_space<vmem>>, vector<1x4x256xf32>
    %48 = vector.shape_cast %47 : vector<1x4x256xf32> to vector<4x256xf32>
    %49 = vector.shape_cast %46 : vector<4x256xf32> to vector<1x4x256xf32>
    tpu.vector_store %arg5[%c0_10, %c0_11, %c0_12], %49 {strides = array<i32>} : memref<1x4x256xf32, #tpu.memory_space<vmem>>, vector<1x4x256xf32>,
    return
  }
  func.func @transform_0(%arg0: i32, %arg1: i32) -> (i32, i32, i32) {
    %c0_i32 = arith.constant 0 : i32
    %c0_i32_0 = arith.constant 0 : i32
    return %arg0, %c0_i32, %arg1 : i32, i32, i32
  }
  func.func @transform_1(%arg0: i32, %arg1: i32) -> (i32, i32) {
    %c0_i32 = arith.constant 0 : i32
    %c0_i32_0 = arith.constant 0 : i32
    %c0_i32_1 = arith.constant 0 : i32
    return %c0_i32, %c0_i32_0 : i32, i32
  }
  func.func @transform_2(%arg0: i32, %arg1: i32) -> (i32, i32) {
    %c0_i32 = arith.constant 0 : i32
    %c0_i32_0 = arith.constant 0 : i32
    %c0_i32_1 = arith.constant 0 : i32
    return %c0_i32, %c0_i32_0 : i32, i32
  }
  func.func @transform_3(%arg0: i32, %arg1: i32) -> (i32, i32, i32) {
    %c0_i32 = arith.constant 0 : i32
    %c0_i32_0 = arith.constant 0 : i32
    return %arg0, %c0_i32, %arg1 : i32, i32, i32
  }
}

</mosaic_0001>

<llo_original>
// kernel: prenorm_conv1x1.1
$region0: #{prenorm_conv1x1.1}
  #allocation0 [shape = 'u32[]', space=smem, size = 0x4, offset = 0x4, fixed_abs, tag = 'smem constant byte address 0x4 - core index']
  #allocation1 [shape = 'u32[144,128]{1,0:T(1,128)}', space=vmem, size = 0x12000, scoped, tag = 'internal scratch']
  %s0 = inlined_call_operand.vmem [shape: f32[2,4,256], index: 0, kind: input, shape index: {}]
  %s1 = inlined_call_operand.vmem [shape: f32[4,4], index: 1, kind: input, shape index: {}]
  %s2 = inlined_call_operand.vmem [shape: f32[4,1], index: 2, kind: input, shape index: {}]
  %s3 = inlined_call_operand.vmem [shape: f32[2,4,256], index: 3, kind: output, shape index: {}]
  %s4 = sld [smem:[#allocation0]]
  $region45: #{prenorm_conv1x1.1} parent=0
    _
  %s6 = ssub.s32 1, %s4
  %s7 = scalar_select 0, %s6, %s4
  loop: start=0, step=1, limit=4
  $region2: #{prenorm_conv1x1.1} parent=0 // loop_pre_header
    _
  $region3: #{prenorm_conv1x1.1} parent=0 // loop_header
    %s9 = sphi 0, %s13
    %p10 = scmp.ge.s32.totalorder %s9, 4
    %s16 = sphi 0, %s28
    %s17 = sphi 0, %s24
    %s18 = sphi 0, %s16
    %s19 = sphi 0, %s17
    %s20 = sphi 0, %s18
    %s21 = sphi 0, %s19
    %s33 = sphi 0, %s35
    %s36 = sphi 0, %s33
    %s37 = sphi 0, %s36
    %s53 = sphi 0, %s37
    %s57 = sphi 0, %s57
    %s59 = sphi 0, %s57
    %s60 = sphi 0, %s59
    %s74 = sphi 0, %s60
    %s78 = sphi 0, %s78
    %s80 = sphi 0, %s78
    %s81 = sphi 0, %s80
    %s95 = sphi 0, %s81
    %s103 = sphi 0, %s105
    %s106 = sphi 0, %s103
    %s107 = sphi 0, %s106
    %s123 = sphi 0, %s107
  $region4: #{prenorm_conv1x1.1} parent=0 // loop_header_branch
    %12 = sbr.rel (%p10) target = $region8
  $region5: #{prenorm_conv1x1.1} parent=0 // loop_body
    %s14 = ssub.s32 %s9, 1
    %s15 = ssub.s32 %s9, 2
    %s22 = sadd.s32 1, %s17
    %p23 = scmp.ge.s32.totalorder %s22, 1
    %s24 = scalar_select %p23, 0, %s22
    %s25 = sadd.s32 1, %s16
    %s26 = scalar_select %p23, %s25, %s16
    %p27 = scmp.ge.s32.totalorder %s26, 2
    %s28 = scalar_select %p27, 0, %s26
    %s29 = ssub.s32 %s16, %s28
    %s30 = ssub.s32 %s17, %s24
    %s31 = sor.u32 %s29, %s30
    %p32 = scmp.eq.s32.totalorder %s31, 0
    %s34 = sadd.s32 %s33, 1
    %s35 = scalar_select %p32, %s33, %s34
    %p38 = pneg %p32
    %p39 = scmp.eq.s32.totalorder %s9, 1
    %p40 = por %p38, %p39
    %p41 = scmp.ne.s32.totalorder %s33, %s36
    %p42 = scmp.eq.s32.totalorder %s9, 0
    %p43 = por %p41, %p42
    %p44 = scmp.ne.s32.totalorder %s33, %s36
    %p45 = scmp.eq.s32.totalorder %s14, 1
    %p46 = por %p44, %p45
    %p47 = scmp.ne.s32.totalorder %s36, %s37
    %p48 = scmp.eq.s32.totalorder %s14, 0
    %p49 = por %p47, %p48
    %p50 = scmp.ne.s32.totalorder %s36, %s37
    %p51 = scmp.eq.s32.totalorder %s15, 1
    %p52 = por %p50, %p51
    %p54 = scmp.ne.s32.totalorder %s37, %s53
    %p55 = scmp.eq.s32.totalorder %s15, 0
    %p56 = por %p54, %p55
    %s58 = sadd.s32 %s57, 1
    %p61 = scmp.eq.s32.totalorder %s9, 1
    %p62 = scmp.ne.s32.totalorder %s57, %s59
    %p63 = scmp.eq.s32.totalorder %s9, 0
    %p64 = por %p62, %p63
    %p65 = scmp.ne.s32.totalorder %s57, %s59
    %p66 = scmp.eq.s32.totalorder %s14, 1
    %p67 = por %p65, %p66
    %p68 = scmp.ne.s32.totalorder %s59, %s60
    %p69 = scmp.eq.s32.totalorder %s14, 0
    %p70 = por %p68, %p69
    %p71 = scmp.ne.s32.totalorder %s59, %s60
    %p72 = scmp.eq.s32.totalorder %s15, 1
    %p73 = por %p71, %p72
    %p75 = scmp.ne.s32.totalorder %s60, %s74
    %p76 = scmp.eq.s32.totalorder %s15, 0
    %p77 = por %p75, %p76
    %s79 = sadd.s32 %s78, 1
    %p82 = scmp.eq.s32.totalorder %s9, 1
    %p83 = scmp.ne.s32.totalorder %s78, %s80
    %p84 = scmp.eq.s32.totalorder %s9, 0
    %p85 = por %p83, %p84
    %p86 = scmp.ne.s32.totalorder %s78, %s80
    %p87 = scmp.eq.s32.totalorder %s14, 1
    %p88 = por %p86, %p87
    %p89 = scmp.ne.s32.totalorder %s80, %s81
    %p90 = scmp.eq.s32.totalorder %s14, 0
    %p91 = por %p89, %p90
    %p92 = scmp.ne.s32.totalorder %s80, %s81
    %p93 = scmp.eq.s32.totalorder %s15, 1
    %p94 = por %p92, %p93
    %p96 = scmp.ne.s32.totalorder %s81, %s95
    %p97 = scmp.eq.s32.totalorder %s15, 0
    %p98 = por %p96, %p97
    %s99 = ssub.s32 %s16, %s28
    %s100 = ssub.s32 %s17, %s24
    %s101 = sor.u32 %s99, %s100
    %p102 = scmp.eq.s32.totalorder %s101, 0
    %s104 = sadd.s32 %s103, 1
    %s105 = scalar_select %p102, %s103, %s104
    %p108 = pneg %p102
    %p109 = scmp.eq.s32.totalorder %s9, 1
    %p110 = por %p108, %p109
    %p111 = scmp.ne.s32.totalorder %s103, %s106
    %p112 = scmp.eq.s32.totalorder %s9, 0
    %p113 = por %p111, %p112
    %p114 = scmp.ne.s32.totalorder %s103, %s106
    %p115 = scmp.eq.s32.totalorder %s14, 1
    %p116 = por %p114, %p115
    %p117 = scmp.ne.s32.totalorder %s106, %s107
    %p118 = scmp.eq.s32.totalorder %s14, 0
    %p119 = por %p117, %p118
    %p120 = scmp.ne.s32.totalorder %s106, %s107
    %p121 = scmp.eq.s32.totalorder %s15, 1
    %p122 = por %p120, %p121
    %p124 = scmp.ne.s32.totalorder %s107, %s123
    %p125 = scmp.eq.s32.totalorder %s15, 0
    %p126 = por %p124, %p125
    %p127 = scmp.le.s32.totalorder 1, %s9
    %p128 = scmp.lt.s32.totalorder %s9, 3
    %p129 = pnand %p127, %p128
    %p130 = pneg %p129
    // Predicated region
    $region9: #{prenorm_conv1x1.1} parent=5 // pred_check
      _
    $region10: #{prenorm_conv1x1.1} parent=5 // pred_check_branch
      %132 = sbr.rel (%p129) target = $region12
    $region11: #{prenorm_conv1x1.1} parent=5 // pred_region
      %s133 = ssub.s32 %s9, 1
      // Predicated region
      $region13: #{prenorm_conv1x1.1} parent=11 // pred_check
        %p134 = pneg %p70
      $region14: #{prenorm_conv1x1.1} parent=11 // pred_check_branch
        %136 = sbr.rel (%p134) target = $region16
      $region15: #{prenorm_conv1x1.1} parent=11 // pred_region
        _
      $region16: #{prenorm_conv1x1.1} parent=11 // pred_fallthru
        _
      // Predicated region
      $region17: #{prenorm_conv1x1.1} parent=11 // pred_check
        %p137 = pneg %p91
      $region18: #{prenorm_conv1x1.1} parent=11 // pred_check_branch
        %139 = sbr.rel (%p137) target = $region20
      $region19: #{prenorm_conv1x1.1} parent=11 // pred_region
        _
      $region20: #{prenorm_conv1x1.1} parent=11 // pred_fallthru
        _
    $region12: #{prenorm_conv1x1.1} parent=5 // pred_fallthru
      _
    %p140 = scmp.lt.s32.totalorder %s9, 2
    // Predicated region
    $region21: #{prenorm_conv1x1.1} parent=5 // pred_check
      %p141 = pneg %p140
    $region22: #{prenorm_conv1x1.1} parent=5 // pred_check_branch
      %143 = sbr.rel (%p141) target = $region24
    $region23: #{prenorm_conv1x1.1} parent=5 // pred_region
      // Predicated region
      $region25: #{prenorm_conv1x1.1} parent=23 // pred_check
        %p144 = pneg %p43
      $region26: #{prenorm_conv1x1.1} parent=23 // pred_check_branch
        %146 = sbr.rel (%p144) target = $region28
      $region27: #{prenorm_conv1x1.1} parent=23 // pred_region
        %s147 = smul.u32 2, %s17
        %p148 = scmp.lt.s32.totalorder %s16, 1
        %s149 = scalar_select %p148, %s16, 1
        %p150 = scmp.lt.s32.totalorder %s147, 1
        %s151 = scalar_select %p150, %s147, 1
        %s152 = smul.addr %s149, 2
        %s153 = sadd.s32 %s151, %s152
        %s154 = smul.addr %s153, 4
        %s155 = scalar_lea.vmem %s0, %s154
        %s156 = smul.u32 2, %s17
      $region28: #{prenorm_conv1x1.1} parent=23 // pred_fallthru
        _
    $region24: #{prenorm_conv1x1.1} parent=5 // pred_fallthru
      _
    %p157 = scmp.le.s32.totalorder 1, %s9
    %p158 = scmp.lt.s32.totalorder %s9, 3
    %p159 = pnand %p157, %p158
    %p160 = pneg %p159
    // Predicated region
    $region29: #{prenorm_conv1x1.1} parent=5 // pred_check
      _
    $region30: #{prenorm_conv1x1.1} parent=5 // pred_check_branch
      %162 = sbr.rel (%p159) target = $region32
    $region31: #{prenorm_conv1x1.1} parent=5 // pred_region
      %s163 = ssub.s32 %s9, 1
      %s164 = smul.u32 2, %s19
      %p165 = scmp.lt.s32.totalorder %s18, 1
      %s166 = scalar_select %p165, %s18, 1
      %p167 = scmp.lt.s32.totalorder %s164, 1
      %s168 = scalar_select %p167, %s164, 1
      %s169 = smul.addr %s166, 2
      %s170 = sadd.s32 %s168, %s169
      %s171 = smul.addr %s170, 4
      %s172 = scalar_lea.vmem %s0, %s171
      %p173 = pneg %p49
      %p174 = pneg %p46
      %p175 = pneg %p70
      %p176 = pneg %p67
      %p177 = pneg %p91
      %p178 = pneg %p88
      %p179 = pneg %p119
      %p180 = pneg %p116
      %s181 = smul.u32 2, %s19
      %p182 = scmp.lt.s32.totalorder %s18, 1
      %s183 = scalar_select %p182, %s18, 1
      %p184 = scmp.lt.s32.totalorder %s181, 1
      %s185 = scalar_select %p184, %s181, 1
      %s186 = smul.addr %s183, 2
      %s187 = sadd.s32 %s185, %s186
      %s188 = smul.addr %s187, 4
      %s189 = scalar_lea.vmem %s3, %s188
      %s190 = smul.u32 2, %s19
      %p191 = scmp.lt.s32.totalorder %s18, 1
      %s192 = scalar_select %p191, %s18, 1
      %p193 = scmp.lt.s32.totalorder %s190, 1
      %s194 = scalar_select %p193, %s190, 1
      %s195 = smul.addr %s192, 2
      %s196 = sadd.s32 %s194, %s195
      %s197 = smul.addr %s196, 4
      %s198 = scalar_lea.vmem %s0, %s197
      %s199 = smul.u32 2, %s19
      %s200 = smul.u32 2, %s19
      %p201 = scmp.lt.s32.totalorder %s18, 1
      %s202 = scalar_select %p201, %s18, 1
      %p203 = scmp.lt.s32.totalorder %s200, 1
      %s204 = scalar_select %p203, %s200, 1
      %s205 = smul.addr %s202, 2
      %s206 = sadd.s32 %s204, %s205
      %s207 = smul.addr %s206, 4
      %s208 = scalar_lea.vmem %s3, %s207
      %s209 = smul.u32 2, %s19
      %v210 = vld [vmem:[%s198] sm:$0xff]
      %v212 = vcombine.high %v210, %v210
      %vm214 = vcmask 1043456
      %v215 = vsel %vm214, %v210, 0.0
      %v216 = vrot.slane %v215, 4
      %v217 = vadd.f32 %v215, %v216
      %v218 = vrot.slane %v217, 2
      %v219 = vadd.f32 %v217, %v218
      %v220 = vrot.slane %v219, 1
      %v221 = vadd.f32 %v219, %v220
      %v222 = vsel %vm214, %v212, 0.0
      %v223 = vrot.slane %v222, 4
      %v224 = vadd.f32 %v222, %v223
      %v225 = vrot.slane %v224, 2
      %v226 = vadd.f32 %v224, %v225
      %v227 = vrot.slane %v226, 1
      %v228 = vadd.f32 %v226, %v227
      %v229 = vmul.f32 %v210, %v210
      %v231 = vcombine.high %v229, %v229
      %v233 = vsel %vm214, %v229, 0.0
      %v234 = vrot.slane %v233, 4
      %v235 = vadd.f32 %v233, %v234
      %v236 = vrot.slane %v235, 2
      %v237 = vadd.f32 %v235, %v236
      %v238 = vrot.slane %v237, 1
      %v239 = vadd.f32 %v237, %v238
      %v240 = vsel %vm214, %v231, 0.0
      %v241 = vrot.slane %v240, 4
      %v242 = vadd.f32 %v240, %v241
      %v243 = vrot.slane %v242, 2
      %v244 = vadd.f32 %v242, %v243
      %v245 = vrot.slane %v244, 1
      %v246 = vadd.f32 %v244, %v245
      %v247 = vmul.f32 %v221, 0.25
      %v248 = vmul.f32 %v228, 0.25
      %v249 = vmul.f32 %v239, 0.25
      %v250 = vmul.f32 %v246, 0.25
      %v251 = vmul.f32 %v247, %v247
      %v252 = vmul.f32 %v248, %v248
      %v253 = vsub.f32 %v249, %v251
      %v254 = vsub.f32 %v250, %v252
      %v255 = vadd.f32 %v253, 1e-05
      %v256 = vadd.f32 %v254, 1e-05
      %v257 = vrsqrt.pop %v255
      %v258 = vrsqrt.pop %v256
      %v261 = vcombine.low %v247, %v248
      %v263 = vsub.f32 %v210, %v261
      %v266 = vcombine.low %v257, %v258
      %v268 = vmul.f32 %v263, %v266
      %v269 = vld [vmem:[%s2] sm:$0xf]
      %v270 = vld [vmem:[%s1] sm:$0xf]
      %272 = vset.pattern.permute.xlu0 0
      %273 = vperm.xlu0 %272, %v270
      %v274 = vpop.permute.xlu0 %273
      %v277 = vlaneseq
      %v278 = vshrl.u32 %v277, 7
      %v279 = vsub.s32 0, %v278
      %v280 = vrot.slane %v268, %v279
      %v281 = vlaneseq
      %v282 = vshrl.u32 %v281, 7
      %v283 = vsub.s32 4, %v282
      %v284 = vrot.slane %v268, %v283
      %v287 = vlaneseq
      %v288 = vshrl.u32 %v287, 7
      %v289 = vsub.s32 0, %v288
      %v290 = vrot.slane %v280, %v289
      %v291 = vlaneseq
      %v292 = vshrl.u32 %v291, 7
      %v293 = vsub.s32 0, %v292
      %v294 = vrot.slane %v284, %v293
      %v295 = vmul.f32 %v274, %v290
      %v296 = vmul.f32 %v274, %v294
      %298 = vset.pattern.permute.xlu0 0
      %299 = vperm.xlu0 %298, %v269
      %v300 = vpop.permute.xlu0 %299
      %v302 = vadd.f32 %v300, %v295
      %v303 = vadd.f32 %v300, %v296
      %304 = vset.pattern.permute.xlu0 1
      %305 = vperm.xlu0 %304, %v270
      %v306 = vpop.permute.xlu0 %305
      %v308 = vlaneseq
      %v309 = vshrl.u32 %v308, 7
      %v310 = vsub.s32 1, %v309
      %v311 = vrot.slane %v268, %v310
      %v312 = vlaneseq
      %v313 = vshrl.u32 %v312, 7
      %v314 = vsub.s32 5, %v313
      %v315 = vrot.slane %v268, %v314
      %v318 = vlaneseq
      %v319 = vshrl.u32 %v318, 7
      %v320 = vsub.s32 1, %v319
      %v321 = vrot.slane %v311, %v320
      %v322 = vlaneseq
      %v323 = vshrl.u32 %v322, 7
      %v324 = vsub.s32 1, %v323
      %v325 = vrot.slane %v315, %v324
      %v326 = vmul.f32 %v306, %v321
      %v327 = vmul.f32 %v306, %v325
      %v328 = vadd.f32 %v302, %v326
      %v329 = vadd.f32 %v303, %v327
      %330 = vset.pattern.permute.xlu0 2
      %331 = vperm.xlu0 %330, %v270
      %v332 = vpop.permute.xlu0 %331
      %v334 = vlaneseq
      %v335 = vshrl.u32 %v334, 7
      %v336 = vsub.s32 2, %v335
      %v337 = vrot.slane %v268, %v336
      %v338 = vlaneseq
      %v339 = vshrl.u32 %v338, 7
      %v340 = vsub.s32 6, %v339
      %v341 = vrot.slane %v268, %v340
      %v344 = vlaneseq
      %v345 = vshrl.u32 %v344, 7
      %v346 = vsub.s32 2, %v345
      %v347 = vrot.slane %v337, %v346
      %v348 = vlaneseq
      %v349 = vshrl.u32 %v348, 7
      %v350 = vsub.s32 2, %v349
      %v351 = vrot.slane %v341, %v350
      %v352 = vmul.f32 %v332, %v347
      %v353 = vmul.f32 %v332, %v351
      %v354 = vadd.f32 %v328, %v352
      %v355 = vadd.f32 %v329, %v353
      %356 = vset.pattern.permute.xlu0 3
      %357 = vperm.xlu0 %356, %v270
      %v358 = vpop.permute.xlu0 %357
      %v360 = vlaneseq
      %v361 = vshrl.u32 %v360, 7
      %v362 = vsub.s32 3, %v361
      %v363 = vrot.slane %v268, %v362
      %v364 = vlaneseq
      %v365 = vshrl.u32 %v364, 7
      %v366 = vsub.s32 7, %v365
      %v367 = vrot.slane %v268, %v366
      %v370 = vlaneseq
      %v371 = vshrl.u32 %v370, 7
      %v372 = vsub.s32 3, %v371
      %v373 = vrot.slane %v363, %v372
      %v374 = vlaneseq
      %v375 = vshrl.u32 %v374, 7
      %v376 = vsub.s32 3, %v375
      %v377 = vrot.slane %v367, %v376
      %v378 = vmul.f32 %v358, %v373
      %v379 = vmul.f32 %v358, %v377
      %v380 = vadd.f32 %v354, %v378
      %v381 = vadd.f32 %v355, %v379
      %v384 = vcombine.low %v380, %v381
      %386 = vst [vmem:[%s208] sm:$0xff] %v384
      %s387 = smul.u32 2, %s19
      %p388 = scmp.lt.s32.totalorder %s18, 1
      %s389 = scalar_select %p388, %s18, 1
      %p390 = scmp.lt.s32.totalorder %s387, 1
      %s391 = scalar_select %p390, %s387, 1
      %s392 = smul.addr %s389, 2
      %s393 = sadd.s32 %s391, %s392
      %s394 = smul.addr %s393, 4
      %s395 = scalar_lea.vmem %s3, %s394
      // Predicated region
      $region33: #{prenorm_conv1x1.1} parent=31 // pred_check
        %p396 = pneg %p116
      $region34: #{prenorm_conv1x1.1} parent=31 // pred_check_branch
        %398 = sbr.rel (%p396) target = $region36
      $region35: #{prenorm_conv1x1.1} parent=31 // pred_region
        %s399 = smul.u32 2, %s19
      $region36: #{prenorm_conv1x1.1} parent=31 // pred_fallthru
        _
    $region32: #{prenorm_conv1x1.1} parent=5 // pred_fallthru
      _
    %p400 = scmp.le.s32.totalorder 2, %s9
    // Predicated region
    $region37: #{prenorm_conv1x1.1} parent=5 // pred_check
      %p401 = pneg %p400
    $region38: #{prenorm_conv1x1.1} parent=5 // pred_check_branch
      %403 = sbr.rel (%p401) target = $region40
    $region39: #{prenorm_conv1x1.1} parent=5 // pred_region
      %s404 = ssub.s32 %s9, 2
      // Predicated region
      $region41: #{prenorm_conv1x1.1} parent=39 // pred_check
        %p405 = pneg %p122
      $region42: #{prenorm_conv1x1.1} parent=39 // pred_check_branch
        %407 = sbr.rel (%p405) target = $region44
      $region43: #{prenorm_conv1x1.1} parent=39 // pred_region
        %s408 = smul.u32 2, %s21
        %p409 = scmp.lt.s32.totalorder %s20, 1
        %s410 = scalar_select %p409, %s20, 1
        %p411 = scmp.lt.s32.totalorder %s408, 1
        %s412 = scalar_select %p411, %s408, 1
        %s413 = smul.addr %s410, 2
        %s414 = sadd.s32 %s412, %s413
        %s415 = smul.addr %s414, 4
        %s416 = scalar_lea.vmem %s3, %s415
      $region44: #{prenorm_conv1x1.1} parent=39 // pred_fallthru
        _
    $region40: #{prenorm_conv1x1.1} parent=5 // pred_fallthru
      _
  $region6: #{prenorm_conv1x1.1} parent=0 // loop_footer
    %s13 = sadd.s32 1, %s9
  $region7: #{prenorm_conv1x1.1} parent=0 // loop_footer_branch
    %8 = sbr.rel target = $region3
  $region8: #{prenorm_conv1x1.1} parent=0 // loop_exit
    _

</llo_original>
